<compile_context>
chip_gen: v7x
topology: tpu7x:2x2x1
jax: 0.10.0
libtpu: 0.0.40
codegen_flags: <defaults>
</compile_context>

<pallas_src>
import functools
import math

import jax
import jax.numpy as jnp
from jax import lax
from jax.experimental import pallas as pl
from jax.experimental.pallas import tpu as pltpu


def _vit_attention_kernel(hs_ref, wq_ref, wk_ref, wv_ref, bq_ref, bk_ref, bv_ref,
                          wo_ref, bo_ref, o_ref, *, scale, inv_heads):
    """One (head, batch) tile: fused QKV projection + softmax attention + per-head output proj."""
    f32 = jnp.float32
    cdims = (((1,), (1,)), ((), ()))      # contract last dim of both operands (x @ w^T)

    x = hs_ref[...]                        # (L, D) in compute dtype (bf16)
    cdt = x.dtype

    # Q/K/V projections straight off the PyTorch (all_head_size, hidden) weight layout:
    # each head is a contiguous row slice, so no transpose is ever materialized.
    q = lax.dot_general(x, wq_ref[...], cdims, preferred_element_type=f32) + bq_ref[...]
    k = lax.dot_general(x, wk_ref[...], cdims, preferred_element_type=f32) + bk_ref[...]
    v = lax.dot_general(x, wv_ref[...], cdims, preferred_element_type=f32) + bv_ref[...]

    # Scaled dot-product attention; scores / softmax kept in f32.
    s = lax.dot_general(q.astype(cdt), k.astype(cdt), cdims,
                        preferred_element_type=f32) * scale            # (L, L)
    s = s - jnp.max(s, axis=-1, keepdims=True)
    p = jnp.exp(s)
    p = p * pl.reciprocal(jnp.sum(p, axis=-1, keepdims=True), approx=True)
    # TODO(synk): attention-probs dropout (eval: identity) and head_mask (None) are omitted.

    ctx = jnp.dot(p.astype(cdt), v.astype(cdt), preferred_element_type=f32)     # (L, h)

    # ViTSelfOutput per-head dense: (L, h) @ (h, D) + bias / num_heads (dropout: identity in eval).
    out = jnp.dot(ctx.astype(cdt), wo_ref[...], preferred_element_type=f32)     # (L, D)
    out = out + bo_ref[...] * inv_heads
    o_ref[...] = out.astype(o_ref.dtype)


def vit_attention_forward(hidden_states, wq, bq, wk, bk, wv, bv, wo, bo,
                          *, compute_dtype=jnp.bfloat16):
    """hidden_states: (num_heads, batch, seq, hidden)
       wq/wk/wv/wo:   (hidden, hidden)  PyTorch nn.Linear layout (out_features, in_features)
       bq/bk/bv/bo:   (hidden,)
       returns attention_output: (num_heads, batch, seq, hidden)
       (present=None / attention probs omitted: use_cache=False, output_attentions=False)."""
    n, b, L, D = hidden_states.shape
    if D % n != 0:
        raise ValueError("hidden size must be a multiple of num_heads")
    h = D // n
    scale = 1.0 / math.sqrt(h)
    inv_heads = 1.0 / n

    # bf16 operands: MXU-native throughput, half the DMA / resident VMEM; accumulation stays f32.
    hs_c = hidden_states.astype(compute_dtype)
    wq_c = wq.astype(compute_dtype)                  # (n*h, D): head i lives in rows [i*h, (i+1)*h)
    wk_c = wk.astype(compute_dtype)
    wv_c = wv.astype(compute_dtype)
    # The module consumes dense.weight.T.view(n, h, D); build that per-head view once here
    # (fused with the bf16 cast) so the output matmul is MXU-natural: (L, h) @ (h, D).
    wo_heads = wo.T.reshape(n, h, D).astype(compute_dtype)
    bq_h = bq.reshape(n, 1, h)
    bk_h = bk.reshape(n, 1, h)
    bv_h = bv.reshape(n, 1, h)
    bo_2d = bo.reshape(1, D)

    cbytes = jnp.dtype(compute_dtype).itemsize
    obytes = jnp.dtype(hidden_states.dtype).itemsize
    flops = int(n * b * (8 * L * D * h + 4 * L * L * h))
    transcendentals = int(n * b * L * L)
    bytes_accessed = int((n * b * L * D) * (cbytes + obytes)   # activations in + out
                         + 4 * D * D * cbytes                  # Wq, Wk, Wv, Wo
                         + 4 * D * 4)                          # biases (f32)

    # Head axis outer -> per-head weight/bias blocks stay resident across the inner batch loop.
    grid = (n, b)
    row_spec = pl.BlockSpec((None, None, L, D), lambda ni, bi: (ni, bi, 0, 0))
    head_w_spec = pl.BlockSpec((h, D), lambda ni, bi: (ni, 0))
    head_b_spec = pl.BlockSpec((None, 1, h), lambda ni, bi: (ni, 0, 0))

    out = pl.pallas_call(
        functools.partial(_vit_attention_kernel, scale=scale, inv_heads=inv_heads),
        out_shape=jax.ShapeDtypeStruct((n, b, L, D), hidden_states.dtype),
        grid_spec=pltpu.PrefetchScalarGridSpec(
            num_scalar_prefetch=0,
            grid=grid,
            in_specs=[
                row_spec,                                                  # hidden_states (head, batch) slab
                head_w_spec, head_w_spec, head_w_spec,                     # Wq, Wk, Wv row-slices
                head_b_spec, head_b_spec, head_b_spec,                     # bq, bk, bv per head
                pl.BlockSpec((None, h, D), lambda ni, bi: (ni, 0, 0)),     # Wo per-head (h, D)
                pl.BlockSpec((1, D), lambda ni, bi: (0, 0)),               # bo
            ],
            out_specs=row_spec,
        ),
        compiler_params=pltpu.CompilerParams(
            dimension_semantics=("parallel", "parallel")),
        cost_estimate=pl.CostEstimate(flops=flops,
                                      transcendentals=transcendentals,
                                      bytes_accessed=bytes_accessed),
    )(hs_c, wq_c, wk_c, wv_c, bq_h, bk_h, bv_h, wo_heads, bo_2d)
    return out


def _vit_attention_reference(hs, wq, bq, wk, bk, wv, bv, wo, bo, num_heads):
    """Plain-JAX mirror of the PyTorch ViTAttention forward (eval mode)."""
    n = num_heads
    D = hs.shape[-1]
    h = D // n

    def proj(w, bias):
        w_heads = w.T.reshape(D, n, h).transpose(1, 0, 2)           # (n, D, h)
        return jnp.einsum('nbld,ndh->bnlh', hs, w_heads) + bias.reshape(1, n, 1, h)

    q = proj(wq, bq)
    k = proj(wk, bk)
    v = proj(wv, bv)
    s = jnp.einsum('bnlh,bnmh->bnlm', q, k) / math.sqrt(h)
    p = jax.nn.softmax(s, axis=-1)
    ctx = jnp.einsum('bnlm,bnmh->bnlh', p, v)
    w_view = wo.T.reshape(n, h, D)
    return jnp.einsum('bnsh,nhd->nbsd', ctx, w_view) + (bo / n).reshape(1, 1, 1, D)


if __name__ == "__main__":
    NUM_HEADS, HEAD_DIM = 4, 16
    HIDDEN = NUM_HEADS * HEAD_DIM          # 64
    BATCH, SEQ = 2, 8

    key = jax.random.PRNGKey(0)
    ks = jax.random.split(key, 9)
    hs = jax.random.normal(ks[0], (NUM_HEADS, BATCH, SEQ, HIDDEN), dtype=jnp.float32)
    wq = jax.random.normal(ks[1], (HIDDEN, HIDDEN), dtype=jnp.float32) * 0.02
    bq = jax.random.normal(ks[2], (HIDDEN,), dtype=jnp.float32) * 0.02
    wk = jax.random.normal(ks[3], (HIDDEN, HIDDEN), dtype=jnp.float32) * 0.02
    bk = jax.random.normal(ks[4], (HIDDEN,), dtype=jnp.float32) * 0.02
    wv = jax.random.normal(ks[5], (HIDDEN, HIDDEN), dtype=jnp.float32) * 0.02
    bv = jax.random.normal(ks[6], (HIDDEN,), dtype=jnp.float32) * 0.02
    wo = jax.random.normal(ks[7], (HIDDEN, HIDDEN), dtype=jnp.float32) * 0.02
    bo = jax.random.normal(ks[8], (HIDDEN,), dtype=jnp.float32) * 0.02

    out = vit_attention_forward(hs, wq, bq, wk, bk, wv, bv, wo, bo)
    out = jax.block_until_ready(out)

    ref = _vit_attention_reference(hs, wq, bq, wk, bk, wv, bv, wo, bo, NUM_HEADS)
    assert out.shape == (NUM_HEADS, BATCH, SEQ, HIDDEN)
    # bf16 MXU operands vs f32 reference -> loose-ish tolerance.
    assert jnp.allclose(out, ref, atol=2e-2, rtol=2e-2), "mismatch vs reference"

    print("KERNEL_OK")
</pallas_src>

<mosaic_0001>
module attributes {stable_mosaic.version = 11 : i64} {
  func.func @_vit_attention_kernel(%arg0: i32, %arg1: i32, %arg2: memref<1x1x8x64xbf16, #tpu.memory_space<vmem>>, %arg3: memref<16x64xbf16, #tpu.memory_space<vmem>>, %arg4: memref<16x64xbf16, #tpu.memory_space<vmem>>, %arg5: memref<16x64xbf16, #tpu.memory_space<vmem>>, %arg6: memref<1x1x16xf32, #tpu.memory_space<vmem>>, %arg7: memref<1x1x16xf32, #tpu.memory_space<vmem>>, %arg8: memref<1x1x16xf32, #tpu.memory_space<vmem>>, %arg9: memref<1x16x64xbf16, #tpu.memory_space<vmem>>, %arg10: memref<1x64xf32, #tpu.memory_space<vmem>>, %arg11: memref<1x1x8x64xf32, #tpu.memory_space<vmem>>) attributes {dimension_semantics = [#tpu.dimension_semantics<parallel>, #tpu.dimension_semantics<parallel>], iteration_bounds = array<i64: 4, 2>, scalar_prefetch = 0 : i64, scratch_operands = 0 : i64, tpu.core_type = #tpu.core_type<tc>, window_params = [{transform_indices = @transform_0, window_bounds = array<i64: 1, 1, 8, 64>}, {transform_indices = @transform_1, window_bounds = array<i64: 16, 64>}, {transform_indices = @transform_2, window_bounds = array<i64: 16, 64>}, {transform_indices = @transform_3, window_bounds = array<i64: 16, 64>}, {transform_indices = @transform_4, window_bounds = array<i64: 1, 1, 16>}, {transform_indices = @transform_5, window_bounds = array<i64: 1, 1, 16>}, {transform_indices = @transform_6, window_bounds = array<i64: 1, 1, 16>}, {transform_indices = @transform_7, window_bounds = array<i64: 1, 16, 64>}, {pipeline_mode = #tpu.pipeline_mode<synchronous>, transform_indices = @transform_8, window_bounds = array<i64: 1, 64>}, {transform_indices = @transform_9, window_bounds = array<i64: 1, 1, 8, 64>}]} {
    %c0 = arith.constant 0 : index
    %c0_0 = arith.constant 0 : index
    %c0_1 = arith.constant 0 : index
    %c0_2 = arith.constant 0 : index
    %0 = vector.load %arg2[%c0, %c0_0, %c0_1, %c0_2] : memref<1x1x8x64xbf16, #tpu.memory_space<vmem>>, vector<1x1x8x64xbf16>
    %1 = vector.shape_cast %0 : vector<1x1x8x64xbf16> to vector<8x64xbf16>
    %c0_3 = arith.constant 0 : index
    %c0_4 = arith.constant 0 : index
    %2 = vector.load %arg3[%c0_3, %c0_4] : memref<16x64xbf16, #tpu.memory_space<vmem>>, vector<16x64xbf16>
    %cst = arith.constant dense<0.000000e+00> : vector<8x16xf32>
    %3 = tpu.matmul %1, %2, %cst {dimension_numbers = #tpu.dot_dimension_numbers<[1], [1], [0], [0], [0, 0, 1, 0], [], []>} : vector<8x64xbf16>, vector<16x64xbf16>, vector<8x16xf32> -> vector<8x16xf32>
    %c0_5 = arith.constant 0 : index
    %c0_6 = arith.constant 0 : index
    %c0_7 = arith.constant 0 : index
    %4 = vector.load %arg6[%c0_5, %c0_6, %c0_7] : memref<1x1x16xf32, #tpu.memory_space<vmem>>, vector<1x1x16xf32>
    %5 = vector.shape_cast %4 : vector<1x1x16xf32> to vector<1x16xf32>
    %6 = vector.broadcast %5 : vector<1x16xf32> to vector<8x16xf32>
    %7 = arith.addf %3, %6 : vector<8x16xf32>
    %c0_8 = arith.constant 0 : index
    %c0_9 = arith.constant 0 : index
    %8 = vector.load %arg4[%c0_8, %c0_9] : memref<16x64xbf16, #tpu.memory_space<vmem>>, vector<16x64xbf16>
    %cst_10 = arith.constant dense<0.000000e+00> : vector<8x16xf32>
    %9 = tpu.matmul %1, %8, %cst_10 {dimension_numbers = #tpu.dot_dimension_numbers<[1], [1], [0], [0], [0, 0, 1, 0], [], []>} : vector<8x64xbf16>, vector<16x64xbf16>, vector<8x16xf32> -> vector<8x16xf32>
    %c0_11 = arith.constant 0 : index
    %c0_12 = arith.constant 0 : index
    %c0_13 = arith.constant 0 : index
    %10 = vector.load %arg7[%c0_11, %c0_12, %c0_13] : memref<1x1x16xf32, #tpu.memory_space<vmem>>, vector<1x1x16xf32>
    %11 = vector.shape_cast %10 : vector<1x1x16xf32> to vector<1x16xf32>
    %12 = vector.broadcast %11 : vector<1x16xf32> to vector<8x16xf32>
    %13 = arith.addf %9, %12 : vector<8x16xf32>
    %c0_14 = arith.constant 0 : index
    %c0_15 = arith.constant 0 : index
    %14 = vector.load %arg5[%c0_14, %c0_15] : memref<16x64xbf16, #tpu.memory_space<vmem>>, vector<16x64xbf16>
    %cst_16 = arith.constant dense<0.000000e+00> : vector<8x16xf32>
    %15 = tpu.matmul %1, %14, %cst_16 {dimension_numbers = #tpu.dot_dimension_numbers<[1], [1], [0], [0], [0, 0, 1, 0], [], []>} : vector<8x64xbf16>, vector<16x64xbf16>, vector<8x16xf32> -> vector<8x16xf32>
    %c0_17 = arith.constant 0 : index
    %c0_18 = arith.constant 0 : index
    %c0_19 = arith.constant 0 : index
    %16 = vector.load %arg8[%c0_17, %c0_18, %c0_19] : memref<1x1x16xf32, #tpu.memory_space<vmem>>, vector<1x1x16xf32>
    %17 = vector.shape_cast %16 : vector<1x1x16xf32> to vector<1x16xf32>
    %18 = vector.broadcast %17 : vector<1x16xf32> to vector<8x16xf32>
    %19 = arith.addf %15, %18 : vector<8x16xf32>
    %20 = arith.truncf %7 : vector<8x16xf32> to vector<8x16xbf16>
    %21 = arith.truncf %13 : vector<8x16xf32> to vector<8x16xbf16>
    %cst_20 = arith.constant dense<0.000000e+00> : vector<8x8xf32>
    %22 = tpu.matmul %20, %21, %cst_20 {dimension_numbers = #tpu.dot_dimension_numbers<[1], [1], [0], [0], [0, 0, 1, 0], [], []>} : vector<8x16xbf16>, vector<8x16xbf16>, vector<8x8xf32> -> vector<8x8xf32>
    %cst_21 = arith.constant 2.500000e-01 : f32
    %23 = vector.broadcast %cst_21 : f32 to vector<8x8xf32>
    %24 = arith.mulf %22, %23 : vector<8x8xf32>
    %cst_22 = arith.constant dense<0xFF800000> : vector<8xf32>
    %25 = vector.multi_reduction <maximumf>, %24, %cst_22 [1] : vector<8x8xf32> to vector<8xf32>
    %26 = vector.shape_cast %25 : vector<8xf32> to vector<8x1xf32>
    %27 = vector.broadcast %26 : vector<8x1xf32> to vector<8x8xf32>
    %28 = arith.subf %24, %27 : vector<8x8xf32>
    %29 = math.exp %28 : vector<8x8xf32>
    %cst_23 = arith.constant dense<0.000000e+00> : vector<8xf32>
    %30 = vector.multi_reduction <add>, %29, %cst_23 [1] : vector<8x8xf32> to vector<8xf32>
    %31 = vector.shape_cast %30 : vector<8xf32> to vector<8x1xf32>
    %32 = tpu.reciprocal %31 {approx = true} : vector<8x1xf32> -> vector<8x1xf32>
    %33 = vector.broadcast %32 : vector<8x1xf32> to vector<8x8xf32>
    %34 = arith.mulf %29, %33 : vector<8x8xf32>
    %35 = arith.truncf %34 : vector<8x8xf32> to vector<8x8xbf16>
    %36 = arith.truncf %19 : vector<8x16xf32> to vector<8x16xbf16>
    %cst_24 = arith.constant dense<0.000000e+00> : vector<8x16xf32>
    %37 = tpu.matmul %35, %36, %cst_24 {dimension_numbers = #tpu.dot_dimension_numbers<[1], [0], [0], [1], [0, 0, 1, 1], [], []>} : vector<8x8xbf16>, vector<8x16xbf16>, vector<8x16xf32> -> vector<8x16xf32>
    %38 = arith.truncf %37 : vector<8x16xf32> to vector<8x16xbf16>
    %c0_25 = arith.constant 0 : index
    %c0_26 = arith.constant 0 : index
    %c0_27 = arith.constant 0 : index
    %39 = vector.load %arg9[%c0_25, %c0_26, %c0_27] : memref<1x16x64xbf16, #tpu.memory_space<vmem>>, vector<1x16x64xbf16>
    %40 = vector.shape_cast %39 : vector<1x16x64xbf16> to vector<16x64xbf16>
    %cst_28 = arith.constant dense<0.000000e+00> : vector<8x64xf32>
    %41 = tpu.matmul %38, %40, %cst_28 {dimension_numbers = #tpu.dot_dimension_numbers<[1], [0], [0], [1], [0, 0, 1, 1], [], []>} : vector<8x16xbf16>, vector<16x64xbf16>, vector<8x64xf32> -> vector<8x64xf32>
    %c0_29 = arith.constant 0 : index
    %c0_30 = arith.constant 0 : index
    %42 = vector.load %arg10[%c0_29, %c0_30] : memref<1x64xf32, #tpu.memory_space<vmem>>, vector<1x64xf32>
    %cst_31 = arith.constant 2.500000e-01 : f32
    %43 = vector.broadcast %cst_31 : f32 to vector<1x64xf32>
    %44 = arith.mulf %42, %43 : vector<1x64xf32>
    %45 = vector.broadcast %44 : vector<1x64xf32> to vector<8x64xf32>
    %46 = arith.addf %41, %45 : vector<8x64xf32>
    %c0_32 = arith.constant 0 : index
    %c0_33 = arith.constant 0 : index
    %c0_34 = arith.constant 0 : index
    %c0_35 = arith.constant 0 : index
    %47 = vector.load %arg11[%c0_32, %c0_33, %c0_34, %c0_35] : memref<1x1x8x64xf32, #tpu.memory_space<vmem>>, vector<1x1x8x64xf32>
    %48 = vector.shape_cast %47 : vector<1x1x8x64xf32> to vector<8x64xf32>
    %49 = vector.shape_cast %46 : vector<8x64xf32> to vector<1x1x8x64xf32>
    tpu.vector_store %arg11[%c0_32, %c0_33, %c0_34, %c0_35], %49 {strides = array<i32>} : memref<1x1x8x64xf32, #tpu.memory_space<vmem>>, vector<1x1x8x64xf32>,
    return
  }
  func.func @transform_0(%arg0: i32, %arg1: i32) -> (i32, i32, i32, i32) {
    %c0_i32 = arith.constant 0 : i32
    %c0_i32_0 = arith.constant 0 : i32
    %c0_i32_1 = arith.constant 0 : i32
    return %arg0, %arg1, %c0_i32, %c0_i32_0 : i32, i32, i32, i32
  }
  func.func @transform_1(%arg0: i32, %arg1: i32) -> (i32, i32) {
    %c0_i32 = arith.constant 0 : i32
    %c0_i32_0 = arith.constant 0 : i32
    return %arg0, %c0_i32 : i32, i32
  }
  func.func @transform_2(%arg0: i32, %arg1: i32) -> (i32, i32) {
    %c0_i32 = arith.constant 0 : i32
    %c0_i32_0 = arith.constant 0 : i32
    return %arg0, %c0_i32 : i32, i32
  }
  func.func @transform_3(%arg0: i32, %arg1: i32) -> (i32, i32) {
    %c0_i32 = arith.constant 0 : i32
    %c0_i32_0 = arith.constant 0 : i32
    return %arg0, %c0_i32 : i32, i32
  }
  func.func @transform_4(%arg0: i32, %arg1: i32) -> (i32, i32, i32) {
    %c0_i32 = arith.constant 0 : i32
    %c0_i32_0 = arith.constant 0 : i32
    %c0_i32_1 = arith.constant 0 : i32
    return %arg0, %c0_i32, %c0_i32_0 : i32, i32, i32
  }
  func.func @transform_5(%arg0: i32, %arg1: i32) -> (i32, i32, i32) {
    %c0_i32 = arith.constant 0 : i32
    %c0_i32_0 = arith.constant 0 : i32
    %c0_i32_1 = arith.constant 0 : i32
    return %arg0, %c0_i32, %c0_i32_0 : i32, i32, i32
  }
  func.func @transform_6(%arg0: i32, %arg1: i32) -> (i32, i32, i32) {
    %c0_i32 = arith.constant 0 : i32
    %c0_i32_0 = arith.constant 0 : i32
    %c0_i32_1 = arith.constant 0 : i32
    return %arg0, %c0_i32, %c0_i32_0 : i32, i32, i32
  }
  func.func @transform_7(%arg0: i32, %arg1: i32) -> (i32, i32, i32) {
    %c0_i32 = arith.constant 0 : i32
    %c0_i32_0 = arith.constant 0 : i32
    %c0_i32_1 = arith.constant 0 : i32
    return %arg0, %c0_i32, %c0_i32_0 : i32, i32, i32
  }
  func.func @transform_8(%arg0: i32, %arg1: i32) -> (i32, i32) {
    %c0_i32 = arith.constant 0 : i32
    %c0_i32_0 = arith.constant 0 : i32
    %c0_i32_1 = arith.constant 0 : i32
    return %c0_i32, %c0_i32_0 : i32, i32
  }
  func.func @transform_9(%arg0: i32, %arg1: i32) -> (i32, i32, i32, i32) {
    %c0_i32 = arith.constant 0 : i32
    %c0_i32_0 = arith.constant 0 : i32
    %c0_i32_1 = arith.constant 0 : i32
    return %arg0, %arg1, %c0_i32, %c0_i32_0 : i32, i32, i32, i32
  }
}

</mosaic_0001>

<llo_original>
// kernel: tpu_custom_call.1
$region0: #{tpu_custom_call.1}
  #allocation0 [shape = 'u32[]', space=smem, size = 0x4, offset = 0x4, fixed_abs, tag = 'smem constant byte address 0x4 - core index']
  #allocation1 [shape = 'u32[144,128]{1,0:T(1,128)}', space=vmem, size = 0x12000, scoped, tag = 'internal scratch']
  %s0 = inlined_call_operand.hbm [shape: bf16[4,2,8,64], index: 0, kind: input, shape index: {}]
  %s1 = inlined_call_operand.hbm [shape: bf16[64,64], index: 1, kind: input, shape index: {}]
  %s2 = inlined_call_operand.hbm [shape: bf16[64,64], index: 2, kind: input, shape index: {}]
  %s3 = inlined_call_operand.hbm [shape: bf16[64,64], index: 3, kind: input, shape index: {}]
  %s4 = inlined_call_operand.vmem [shape: f32[4,1,16], index: 4, kind: input, shape index: {}]
  %s5 = inlined_call_operand.vmem [shape: f32[4,1,16], index: 5, kind: input, shape index: {}]
  %s6 = inlined_call_operand.vmem [shape: f32[4,1,16], index: 6, kind: input, shape index: {}]
  %s7 = inlined_call_operand.hbm [shape: bf16[4,16,64], index: 7, kind: input, shape index: {}]
  %s8 = inlined_call_operand.vmem [shape: f32[1,64], index: 8, kind: input, shape index: {}]
  %s9 = inlined_call_operand.hbm [shape: f32[4,2,8,64], index: 9, kind: output, shape index: {}]
  %s10 = sld [smem:[#allocation0]]
  $region89: #{tpu_custom_call.1} parent=0
    _
  %s12 = ssub.s32 1, %s10
  %s13 = scalar_select 0, %s12, %s10
  $region1: #{tpu_custom_call.1} parent=0
    #allocation2 [shape = 'u8[4096]{0}', space=vmem, size = 0x1000, scoped, tag = 'input window, operand 0']
    #allocation3 [shape = 's32[2]{0}', space=sflag, size = 0x8, scoped, tag = 'scoped memory for tpu_custom_call.1']
    #allocation4 [shape = 's32[2]{0}', space=sflag, size = 0x8, scoped, tag = 'scoped memory for tpu_custom_call.1']
    #allocation5 [shape = 'u8[8192]{0}', space=vmem, size = 0x2000, scoped, tag = 'input window, operand 1']
    #allocation6 [shape = 's32[2]{0}', space=sflag, size = 0x8, scoped, tag = 'scoped memory for tpu_custom_call.1']
    #allocation7 [shape = 'u8[8192]{0}', space=vmem, size = 0x2000, scoped, tag = 'input window, operand 2']
    #allocation8 [shape = 'u8[8192]{0}', space=vmem, size = 0x2000, scoped, tag = 'input window, operand 3']
    #allocation9 [shape = 's32[2]{0}', space=sflag, size = 0x8, scoped, tag = 'scoped memory for tpu_custom_call.1']
    #allocation10 [shape = 'u8[8192]{0}', space=vmem, size = 0x2000, scoped, tag = 'input window, operand 7']
    #allocation11 [shape = 'u8[8192]{0}', space=vmem, size = 0x2000, scoped, tag = 'output window, operand 0']
    %14 = vsyncpa [#allocation3], 0
    %s15 = scalar_lea.sflag [#allocation3], 1
    %16 = vsyncpa %s15, 0
    %17 = vsyncpa [#allocation6], 0
    %s18 = scalar_lea.sflag [#allocation6], 1
    %19 = vsyncpa %s18, 0
    %20 = vsyncpa [#allocation9], 0
    %s21 = scalar_lea.sflag [#allocation9], 1
    %22 = vsyncpa %s21, 0
    %23 = vsyncpa [#allocation4], 0
    %s24 = scalar_lea.sflag [#allocation4], 1
    %25 = vsyncpa %s24, 0
    loop: start=0, step=1, limit=10
    $region2: #{tpu_custom_call.1} parent=1 // loop_pre_header
      _
    $region3: #{tpu_custom_call.1} parent=1 // loop_header
      %s27 = sphi 0, %s31
      %p28 = scmp.ge.s32.totalorder %s27, 10
      %s34 = sphi 0, %s46
      %s35 = sphi 0, %s42
      %s36 = sphi 0, %s34
      %s37 = sphi 0, %s35
      %s38 = sphi 0, %s36
      %s39 = sphi 0, %s37
      %s51 = sphi 0, %s53
      %s54 = sphi 0, %s51
      %s55 = sphi 0, %s54
      %s71 = sphi 0, %s55
      %s77 = sphi 0, %s79
      %s80 = sphi 0, %s77
      %s81 = sphi 0, %s80
      %s97 = sphi 0, %s81
      %s103 = sphi 0, %s105
      %s106 = sphi 0, %s103
      %s107 = sphi 0, %s106
      %s123 = sphi 0, %s107
      %s129 = sphi 0, %s131
      %s132 = sphi 0, %s129
      %s133 = sphi 0, %s132
      %s149 = sphi 0, %s133
      %s155 = sphi 0, %s157
      %s158 = sphi 0, %s155
      %s159 = sphi 0, %s158
      %s175 = sphi 0, %s159
      %s181 = sphi 0, %s183
      %s184 = sphi 0, %s181
      %s185 = sphi 0, %s184
      %s201 = sphi 0, %s185
      %s207 = sphi 0, %s209
      %s210 = sphi 0, %s207
      %s211 = sphi 0, %s210
      %s227 = sphi 0, %s211
      %s233 = sphi 0, %s235
      %s236 = sphi 0, %s233
      %s237 = sphi 0, %s236
      %s253 = sphi 0, %s237
      %s257 = sphi 0, %s257
      %s259 = sphi 0, %s257
      %s260 = sphi 0, %s259
      %s274 = sphi 0, %s260
      %s282 = sphi 0, %s284
      %s285 = sphi 0, %s282
      %s286 = sphi 0, %s285
      %s302 = sphi 0, %s286
    $region4: #{tpu_custom_call.1} parent=1 // loop_header_branch
      %30 = sbr.rel (%p28) target = $region8
    $region5: #{tpu_custom_call.1} parent=1 // loop_body
      %s32 = ssub.s32 %s27, 1
      %s33 = ssub.s32 %s27, 2
      %s40 = sadd.s32 1, %s35
      %p41 = scmp.ge.s32.totalorder %s40, 2
      %s42 = scalar_select %p41, 0, %s40
      %s43 = sadd.s32 1, %s34
      %s44 = scalar_select %p41, %s43, %s34
      %p45 = scmp.ge.s32.totalorder %s44, 4
      %s46 = scalar_select %p45, 0, %s44
      %s47 = ssub.s32 %s34, %s46
      %s48 = ssub.s32 %s35, %s42
      %s49 = sor.u32 %s47, %s48
      %p50 = scmp.eq.s32.totalorder %s49, 0
      %s52 = sadd.s32 %s51, 1
      %s53 = scalar_select %p50, %s51, %s52
      %p56 = pneg %p50
      %p57 = scmp.eq.s32.totalorder %s27, 7
      %p58 = por %p56, %p57
      %p59 = scmp.ne.s32.totalorder %s51, %s54
      %p60 = scmp.eq.s32.totalorder %s27, 0
      %p61 = por %p59, %p60
      %p62 = scmp.ne.s32.totalorder %s51, %s54
      %p63 = scmp.eq.s32.totalorder %s32, 7
      %p64 = por %p62, %p63
      %p65 = scmp.ne.s32.totalorder %s54, %s55
      %p66 = scmp.eq.s32.totalorder %s32, 0
      %p67 = por %p65, %p66
      %p68 = scmp.ne.s32.totalorder %s54, %s55
      %p69 = scmp.eq.s32.totalorder %s33, 7
      %p70 = por %p68, %p69
      %p72 = scmp.ne.s32.totalorder %s55, %s71
      %p73 = scmp.eq.s32.totalorder %s33, 0
      %p74 = por %p72, %p73
      %s75 = ssub.s32 %s34, %s46
      %p76 = scmp.eq.s32.totalorder %s75, 0
      %s78 = sadd.s32 %s77, 1
      %s79 = scalar_select %p76, %s77, %s78
      %p82 = pneg %p76
      %p83 = scmp.eq.s32.totalorder %s27, 7
      %p84 = por %p82, %p83
      %p85 = scmp.ne.s32.totalorder %s77, %s80
      %p86 = scmp.eq.s32.totalorder %s27, 0
      %p87 = por %p85, %p86
      %p88 = scmp.ne.s32.totalorder %s77, %s80
      %p89 = scmp.eq.s32.totalorder %s32, 7
      %p90 = por %p88, %p89
      %p91 = scmp.ne.s32.totalorder %s80, %s81
      %p92 = scmp.eq.s32.totalorder %s32, 0
      %p93 = por %p91, %p92
      %p94 = scmp.ne.s32.totalorder %s80, %s81
      %p95 = scmp.eq.s32.totalorder %s33, 7
      %p96 = por %p94, %p95
      %p98 = scmp.ne.s32.totalorder %s81, %s97
      %p99 = scmp.eq.s32.totalorder %s33, 0
      %p100 = por %p98, %p99
      %s101 = ssub.s32 %s34, %s46
      %p102 = scmp.eq.s32.totalorder %s101, 0
      %s104 = sadd.s32 %s103, 1
      %s105 = scalar_select %p102, %s103, %s104
      %p108 = pneg %p102
      %p109 = scmp.eq.s32.totalorder %s27, 7
      %p110 = por %p108, %p109
      %p111 = scmp.ne.s32.totalorder %s103, %s106
      %p112 = scmp.eq.s32.totalorder %s27, 0
      %p113 = por %p111, %p112
      %p114 = scmp.ne.s32.totalorder %s103, %s106
      %p115 = scmp.eq.s32.totalorder %s32, 7
      %p116 = por %p114, %p115
      %p117 = scmp.ne.s32.totalorder %s106, %s107
      %p118 = scmp.eq.s32.totalorder %s32, 0
      %p119 = por %p117, %p118
      %p120 = scmp.ne.s32.totalorder %s106, %s107
      %p121 = scmp.eq.s32.totalorder %s33, 7
      %p122 = por %p120, %p121
      %p124 = scmp.ne.s32.totalorder %s107, %s123
      %p125 = scmp.eq.s32.totalorder %s33, 0
      %p126 = por %p124, %p125
      %s127 = ssub.s32 %s34, %s46
      %p128 = scmp.eq.s32.totalorder %s127, 0
      %s130 = sadd.s32 %s129, 1
      %s131 = scalar_select %p128, %s129, %s130
      %p134 = pneg %p128
      %p135 = scmp.eq.s32.totalorder %s27, 7
      %p136 = por %p134, %p135
      %p137 = scmp.ne.s32.totalorder %s129, %s132
      %p138 = scmp.eq.s32.totalorder %s27, 0
      %p139 = por %p137, %p138
      %p140 = scmp.ne.s32.totalorder %s129, %s132
      %p141 = scmp.eq.s32.totalorder %s32, 7
      %p142 = por %p140, %p141
      %p143 = scmp.ne.s32.totalorder %s132, %s133
      %p144 = scmp.eq.s32.totalorder %s32, 0
      %p145 = por %p143, %p144
      %p146 = scmp.ne.s32.totalorder %s132, %s133
      %p147 = scmp.eq.s32.totalorder %s33, 7
      %p148 = por %p146, %p147
      %p150 = scmp.ne.s32.totalorder %s133, %s149
      %p151 = scmp.eq.s32.totalorder %s33, 0
      %p152 = por %p150, %p151
      %s153 = ssub.s32 %s34, %s46
      %p154 = scmp.eq.s32.totalorder %s153, 0
      %s156 = sadd.s32 %s155, 1
      %s157 = scalar_select %p154, %s155, %s156
      %p160 = pneg %p154
      %p161 = scmp.eq.s32.totalorder %s27, 7
      %p162 = por %p160, %p161
      %p163 = scmp.ne.s32.totalorder %s155, %s158
      %p164 = scmp.eq.s32.totalorder %s27, 0
      %p165 = por %p163, %p164
      %p166 = scmp.ne.s32.totalorder %s155, %s158
      %p167 = scmp.eq.s32.totalorder %s32, 7
      %p168 = por %p166, %p167
      %p169 = scmp.ne.s32.totalorder %s158, %s159
      %p170 = scmp.eq.s32.totalorder %s32, 0
      %p171 = por %p169, %p170
      %p172 = scmp.ne.s32.totalorder %s158, %s159
      %p173 = scmp.eq.s32.totalorder %s33, 7
      %p174 = por %p172, %p173
      %p176 = scmp.ne.s32.totalorder %s159, %s175
      %p177 = scmp.eq.s32.totalorder %s33, 0
      %p178 = por %p176, %p177
      %s179 = ssub.s32 %s34, %s46
      %p180 = scmp.eq.s32.totalorder %s179, 0
      %s182 = sadd.s32 %s181, 1
      %s183 = scalar_select %p180, %s181, %s182
      %p186 = pneg %p180
      %p187 = scmp.eq.s32.totalorder %s27, 7
      %p188 = por %p186, %p187
      %p189 = scmp.ne.s32.totalorder %s181, %s184
      %p190 = scmp.eq.s32.totalorder %s27, 0
      %p191 = por %p189, %p190
      %p192 = scmp.ne.s32.totalorder %s181, %s184
      %p193 = scmp.eq.s32.totalorder %s32, 7
      %p194 = por %p192, %p193
      %p195 = scmp.ne.s32.totalorder %s184, %s185
      %p196 = scmp.eq.s32.totalorder %s32, 0
      %p197 = por %p195, %p196
      %p198 = scmp.ne.s32.totalorder %s184, %s185
      %p199 = scmp.eq.s32.totalorder %s33, 7
      %p200 = por %p198, %p199
      %p202 = scmp.ne.s32.totalorder %s185, %s201
      %p203 = scmp.eq.s32.totalorder %s33, 0
      %p204 = por %p202, %p203
      %s205 = ssub.s32 %s34, %s46
      %p206 = scmp.eq.s32.totalorder %s205, 0
      %s208 = sadd.s32 %s207, 1
      %s209 = scalar_select %p206, %s207, %s208
      %p212 = pneg %p206
      %p213 = scmp.eq.s32.totalorder %s27, 7
      %p214 = por %p212, %p213
      %p215 = scmp.ne.s32.totalorder %s207, %s210
      %p216 = scmp.eq.s32.totalorder %s27, 0
      %p217 = por %p215, %p216
      %p218 = scmp.ne.s32.totalorder %s207, %s210
      %p219 = scmp.eq.s32.totalorder %s32, 7
      %p220 = por %p218, %p219
      %p221 = scmp.ne.s32.totalorder %s210, %s211
      %p222 = scmp.eq.s32.totalorder %s32, 0
      %p223 = por %p221, %p222
      %p224 = scmp.ne.s32.totalorder %s210, %s211
      %p225 = scmp.eq.s32.totalorder %s33, 7
      %p226 = por %p224, %p225
      %p228 = scmp.ne.s32.totalorder %s211, %s227
      %p229 = scmp.eq.s32.totalorder %s33, 0
      %p230 = por %p228, %p229
      %s231 = ssub.s32 %s34, %s46
      %p232 = scmp.eq.s32.totalorder %s231, 0
      %s234 = sadd.s32 %s233, 1
      %s235 = scalar_select %p232, %s233, %s234
      %p238 = pneg %p232
      %p239 = scmp.eq.s32.totalorder %s27, 7
      %p240 = por %p238, %p239
      %p241 = scmp.ne.s32.totalorder %s233, %s236
      %p242 = scmp.eq.s32.totalorder %s27, 0
      %p243 = por %p241, %p242
      %p244 = scmp.ne.s32.totalorder %s233, %s236
      %p245 = scmp.eq.s32.totalorder %s32, 7
      %p246 = por %p244, %p245
      %p247 = scmp.ne.s32.totalorder %s236, %s237
      %p248 = scmp.eq.s32.totalorder %s32, 0
      %p249 = por %p247, %p248
      %p250 = scmp.ne.s32.totalorder %s236, %s237
      %p251 = scmp.eq.s32.totalorder %s33, 7
      %p252 = por %p250, %p251
      %p254 = scmp.ne.s32.totalorder %s237, %s253
      %p255 = scmp.eq.s32.totalorder %s33, 0
      %p256 = por %p254, %p255
      %s258 = sadd.s32 %s257, 1
      %p261 = scmp.eq.s32.totalorder %s27, 7
      %p262 = scmp.ne.s32.totalorder %s257, %s259
      %p263 = scmp.eq.s32.totalorder %s27, 0
      %p264 = por %p262, %p263
      %p265 = scmp.ne.s32.totalorder %s257, %s259
      %p266 = scmp.eq.s32.totalorder %s32, 7
      %p267 = por %p265, %p266
      %p268 = scmp.ne.s32.totalorder %s259, %s260
      %p269 = scmp.eq.s32.totalorder %s32, 0
      %p270 = por %p268, %p269
      %p271 = scmp.ne.s32.totalorder %s259, %s260
      %p272 = scmp.eq.s32.totalorder %s33, 7
      %p273 = por %p271, %p272
      %p275 = scmp.ne.s32.totalorder %s260, %s274
      %p276 = scmp.eq.s32.totalorder %s33, 0
      %p277 = por %p275, %p276
      %s278 = ssub.s32 %s34, %s46
      %s279 = ssub.s32 %s35, %s42
      %s280 = sor.u32 %s278, %s279
      %p281 = scmp.eq.s32.totalorder %s280, 0
      %s283 = sadd.s32 %s282, 1
      %s284 = scalar_select %p281, %s282, %s283
      %p287 = pneg %p281
      %p288 = scmp.eq.s32.totalorder %s27, 7
      %p289 = por %p287, %p288
      %p290 = scmp.ne.s32.totalorder %s282, %s285
      %p291 = scmp.eq.s32.totalorder %s27, 0
      %p292 = por %p290, %p291
      %p293 = scmp.ne.s32.totalorder %s282, %s285
      %p294 = scmp.eq.s32.totalorder %s32, 7
      %p295 = por %p293, %p294
      %p296 = scmp.ne.s32.totalorder %s285, %s286
      %p297 = scmp.eq.s32.totalorder %s32, 0
      %p298 = por %p296, %p297
      %p299 = scmp.ne.s32.totalorder %s285, %s286
      %p300 = scmp.eq.s32.totalorder %s33, 7
      %p301 = por %p299, %p300
      %p303 = scmp.ne.s32.totalorder %s286, %s302
      %p304 = scmp.eq.s32.totalorder %s33, 0
      %p305 = por %p303, %p304
      %p306 = scmp.le.s32.totalorder 1, %s27
      %p307 = scmp.lt.s32.totalorder %s27, 9
      %p308 = pnand %p306, %p307
      %p309 = pneg %p308
      // Predicated region
      $region9: #{tpu_custom_call.1} parent=5 // pred_check
        _
      $region10: #{tpu_custom_call.1} parent=5 // pred_check_branch
        %311 = sbr.rel (%p308) target = $region12
      $region11: #{tpu_custom_call.1} parent=5 // pred_region
        %s312 = ssub.s32 %s27, 1
        // Predicated region
        $region13: #{tpu_custom_call.1} parent=11 // pred_check
          %p313 = pneg %p270
        $region14: #{tpu_custom_call.1} parent=11 // pred_check_branch
          %315 = sbr.rel (%p313) target = $region16
        $region15: #{tpu_custom_call.1} parent=11 // pred_region
          _
        $region16: #{tpu_custom_call.1} parent=11 // pred_fallthru
          _
      $region12: #{tpu_custom_call.1} parent=5 // pred_fallthru
        _
      %p316 = scmp.lt.s32.totalorder %s27, 8
      // Predicated region
      $region17: #{tpu_custom_call.1} parent=5 // pred_check
        %p317 = pneg %p316
      $region18: #{tpu_custom_call.1} parent=5 // pred_check_branch
        %319 = sbr.rel (%p317) target = $region20
      $region19: #{tpu_custom_call.1} parent=5 // pred_region
        // Predicated region
        $region21: #{tpu_custom_call.1} parent=19 // pred_check
          %p320 = pneg %p61
        $region22: #{tpu_custom_call.1} parent=19 // pred_check_branch
          %322 = sbr.rel (%p320) target = $region24
        $region23: #{tpu_custom_call.1} parent=19 // pred_region
          %s323 = sand.u32 %s51, 1
          %s324 = scalar_lea.sflag [#allocation3], %s323
          %s325 = sand.u32 %s51, 1
          %s326 = smul.addr %s325, 4
          %s327 = scalar_lea.vmem [#allocation2], %s326
          %s329 = ssub.s32 64, 64
          %330 = vsyncadd %s324, %s329
          %s331 = smul.addr %s34, 2
          %s332 = sadd.s32 %s35, %s331
          %s333 = smul.addr %s332, 64
          %s334 = scalar_lea.hbm %s0, %s333
          %s336 = sshll.u32 %s327, 4
          %s337 = int_to_ptr.vmem [resolvable:$true] %s336
          %339 = dma.hbm_to_vmem [thread:$0]  %s334, 64, %s337, %s324
        $region24: #{tpu_custom_call.1} parent=19 // pred_fallthru
          _
        // Predicated region
        $region25: #{tpu_custom_call.1} parent=19 // pred_check
          %p340 = pneg %p87
        $region26: #{tpu_custom_call.1} parent=19 // pred_check_branch
          %342 = sbr.rel (%p340) target = $region28
        $region27: #{tpu_custom_call.1} parent=19 // pred_region
          %s343 = sand.u32 %s27, 1
          %s344 = scalar_lea.sflag [#allocation6], %s343
          %s345 = sand.u32 %s77, 1
          %s346 = smul.addr %s345, 8
          %s347 = scalar_lea.vmem [#allocation5], %s346
          %s348 = smul.u32 2, %s34
          %s350 = ssub.s32 128, 128
          %351 = vsyncadd %s344, %s350
          %s352 = smul.addr %s348, 64
          %s353 = scalar_lea.hbm %s1, %s352
          %s354 = sshll.u32 %s347, 4
          %s355 = int_to_ptr.vmem [resolvable:$true] %s354
          %360 = dma.hbm_to_vmem [thread:$0]  %s353, 128, %s355, %s344, 64, 64, 4
        $region28: #{tpu_custom_call.1} parent=19 // pred_fallthru
          _
        // Predicated region
        $region29: #{tpu_custom_call.1} parent=19 // pred_check
          %p361 = pneg %p113
        $region30: #{tpu_custom_call.1} parent=19 // pred_check_branch
          %363 = sbr.rel (%p361) target = $region32
        $region31: #{tpu_custom_call.1} parent=19 // pred_region
          %s364 = sand.u32 %s27, 1
          %s365 = scalar_lea.sflag [#allocation6], %s364
          %s366 = sand.u32 %s103, 1
          %s367 = smul.addr %s366, 8
          %s368 = scalar_lea.vmem [#allocation7], %s367
          %s369 = smul.u32 2, %s34
          %s371 = ssub.s32 128, 128
          %372 = vsyncadd %s365, %s371
          %s373 = smul.addr %s369, 64
          %s374 = scalar_lea.hbm %s2, %s373
          %s375 = sshll.u32 %s368, 4
          %s376 = int_to_ptr.vmem [resolvable:$true] %s375
          %381 = dma.hbm_to_vmem [thread:$0]  %s374, 128, %s376, %s365, 64, 64, 4
        $region32: #{tpu_custom_call.1} parent=19 // pred_fallthru
          _
        // Predicated region
        $region33: #{tpu_custom_call.1} parent=19 // pred_check
          %p382 = pneg %p139
        $region34: #{tpu_custom_call.1} parent=19 // pred_check_branch
          %384 = sbr.rel (%p382) target = $region36
        $region35: #{tpu_custom_call.1} parent=19 // pred_region
          %s385 = sand.u32 %s27, 1
          %s386 = scalar_lea.sflag [#allocation9], %s385
          %s387 = sand.u32 %s129, 1
          %s388 = smul.addr %s387, 8
          %s389 = scalar_lea.vmem [#allocation8], %s388
          %s390 = smul.u32 2, %s34
          %s392 = ssub.s32 128, 128
          %393 = vsyncadd %s386, %s392
          %s394 = smul.addr %s390, 64
          %s395 = scalar_lea.hbm %s3, %s394
          %s396 = sshll.u32 %s389, 4
          %s397 = int_to_ptr.vmem [resolvable:$true] %s396
          %402 = dma.hbm_to_vmem [thread:$0]  %s395, 128, %s397, %s386, 64, 64, 4
        $region36: #{tpu_custom_call.1} parent=19 // pred_fallthru
          _
        // Predicated region
        $region37: #{tpu_custom_call.1} parent=19 // pred_check
          %p403 = pneg %p165
        $region38: #{tpu_custom_call.1} parent=19 // pred_check_branch
          %405 = sbr.rel (%p403) target = $region40
        $region39: #{tpu_custom_call.1} parent=19 // pred_region
          %p406 = scmp.lt.s32.totalorder %s34, 3
          %s407 = scalar_select %p406, %s34, 3
          %s408 = scalar_lea.vmem %s4, %s407
        $region40: #{tpu_custom_call.1} parent=19 // pred_fallthru
          _
        // Predicated region
        $region41: #{tpu_custom_call.1} parent=19 // pred_check
          %p409 = pneg %p191
        $region42: #{tpu_custom_call.1} parent=19 // pred_check_branch
          %411 = sbr.rel (%p409) target = $region44
        $region43: #{tpu_custom_call.1} parent=19 // pred_region
          %p412 = scmp.lt.s32.totalorder %s34, 3
          %s413 = scalar_select %p412, %s34, 3
          %s414 = scalar_lea.vmem %s5, %s413
        $region44: #{tpu_custom_call.1} parent=19 // pred_fallthru
          _
        // Predicated region
        $region45: #{tpu_custom_call.1} parent=19 // pred_check
          %p415 = pneg %p217
        $region46: #{tpu_custom_call.1} parent=19 // pred_check_branch
          %417 = sbr.rel (%p415) target = $region48
        $region47: #{tpu_custom_call.1} parent=19 // pred_region
          %p418 = scmp.lt.s32.totalorder %s34, 3
          %s419 = scalar_select %p418, %s34, 3
          %s420 = scalar_lea.vmem %s6, %s419
        $region48: #{tpu_custom_call.1} parent=19 // pred_fallthru
          _
        // Predicated region
        $region49: #{tpu_custom_call.1} parent=19 // pred_check
          %p421 = pneg %p243
        $region50: #{tpu_custom_call.1} parent=19 // pred_check_branch
          %423 = sbr.rel (%p421) target = $region52
        $region51: #{tpu_custom_call.1} parent=19 // pred_region
          %s424 = sand.u32 %s27, 1
          %s425 = scalar_lea.sflag [#allocation9], %s424
          %s426 = sand.u32 %s233, 1
          %s427 = smul.addr %s426, 8
          %s428 = scalar_lea.vmem [#allocation10], %s427
          %s430 = ssub.s32 128, 128
          %431 = vsyncadd %s425, %s430
          %s432 = smul.addr %s34, 2
          %s433 = smul.addr %s432, 64
          %s434 = scalar_lea.hbm %s7, %s433
          %s435 = sshll.u32 %s428, 4
          %s436 = int_to_ptr.vmem [resolvable:$true] %s435
          %441 = dma.hbm_to_vmem [thread:$0]  %s434, 128, %s436, %s425, 64, 64, 4
        $region52: #{tpu_custom_call.1} parent=19 // pred_fallthru
          _
      $region20: #{tpu_custom_call.1} parent=5 // pred_fallthru
        _
      %p442 = scmp.le.s32.totalorder 1, %s27
      %p443 = scmp.lt.s32.totalorder %s27, 9
      %p444 = pnand %p442, %p443
      %p445 = pneg %p444
      // Predicated region
      $region53: #{tpu_custom_call.1} parent=5 // pred_check
        _
      $region54: #{tpu_custom_call.1} parent=5 // pred_check_branch
        %447 = sbr.rel (%p444) target = $region56
      $region55: #{tpu_custom_call.1} parent=5 // pred_region
        %s448 = ssub.s32 %s27, 1
        %s449 = sand.u32 %s54, 1
        %s450 = scalar_lea.sflag [#allocation3], %s449
        %s451 = sand.u32 %s54, 1
        %s452 = smul.addr %s451, 4
        %s453 = scalar_lea.vmem [#allocation2], %s452
        // Predicated region
        $region57: #{tpu_custom_call.1} parent=55 // pred_check
          %p454 = pneg %p67
        $region58: #{tpu_custom_call.1} parent=55 // pred_check_branch
          %456 = sbr.rel (%p454) target = $region60
        $region59: #{tpu_custom_call.1} parent=55 // pred_region
          %457 = dma.done %s450, 64
        $region60: #{tpu_custom_call.1} parent=55 // pred_fallthru
          _
        %s458 = sand.u32 %s32, 1
        %s459 = scalar_lea.sflag [#allocation6], %s458
        %s460 = sand.u32 %s80, 1
        %s461 = smul.addr %s460, 8
        %s462 = scalar_lea.vmem [#allocation5], %s461
        // Predicated region
        $region61: #{tpu_custom_call.1} parent=55 // pred_check
          %p463 = pneg %p93
        $region62: #{tpu_custom_call.1} parent=55 // pred_check_branch
          %465 = sbr.rel (%p463) target = $region64
        $region63: #{tpu_custom_call.1} parent=55 // pred_region
          %466 = dma.done %s459, 128
        $region64: #{tpu_custom_call.1} parent=55 // pred_fallthru
          _
        %s467 = sand.u32 %s32, 1
        %s468 = scalar_lea.sflag [#allocation6], %s467
        %s469 = sand.u32 %s106, 1
        %s470 = smul.addr %s469, 8
        %s471 = scalar_lea.vmem [#allocation7], %s470
        // Predicated region
        $region65: #{tpu_custom_call.1} parent=55 // pred_check
          %p472 = pneg %p119
        $region66: #{tpu_custom_call.1} parent=55 // pred_check_branch
          %474 = sbr.rel (%p472) target = $region68
        $region67: #{tpu_custom_call.1} parent=55 // pred_region
          %475 = dma.done %s468, 128
        $region68: #{tpu_custom_call.1} parent=55 // pred_fallthru
          _
        %s476 = sand.u32 %s32, 1
        %s477 = scalar_lea.sflag [#allocation9], %s476
        %s478 = sand.u32 %s132, 1
        %s479 = smul.addr %s478, 8
        %s480 = scalar_lea.vmem [#allocation8], %s479
        // Predicated region
        $region69: #{tpu_custom_call.1} parent=55 // pred_check
          %p481 = pneg %p145
        $region70: #{tpu_custom_call.1} parent=55 // pred_check_branch
          %483 = sbr.rel (%p481) target = $region72
        $region71: #{tpu_custom_call.1} parent=55 // pred_region
          %484 = dma.done %s477, 128
        $region72: #{tpu_custom_call.1} parent=55 // pred_fallthru
          _
        %s485 = sand.u32 %s32, 1
        %s486 = scalar_lea.sflag [#allocation9], %s485
        %s487 = sand.u32 %s236, 1
        %s488 = smul.addr %s487, 8
        %s489 = scalar_lea.vmem [#allocation10], %s488
        // Predicated region
        $region73: #{tpu_custom_call.1} parent=55 // pred_check
          %p490 = pneg %p249
        $region74: #{tpu_custom_call.1} parent=55 // pred_check_branch
          %492 = sbr.rel (%p490) target = $region76
        $region75: #{tpu_custom_call.1} parent=55 // pred_region
          %493 = dma.done %s486, 128
        $region76: #{tpu_custom_call.1} parent=55 // pred_fallthru
          _
        %s494 = sand.u32 %s54, 1
        %s495 = scalar_lea.sflag [#allocation3], %s494
        %s496 = sand.u32 %s54, 1
        %s497 = smul.addr %s496, 4
        %s498 = scalar_lea.vmem [#allocation2], %s497
        %p499 = pneg %p67
        %p500 = pneg %p64
        %s501 = sand.u32 %s32, 1
        %s502 = scalar_lea.sflag [#allocation6], %s501
        %s503 = sand.u32 %s80, 1
        %s504 = smul.addr %s503, 8
        %s505 = scalar_lea.vmem [#allocation5], %s504
        %p506 = pneg %p93
        %p507 = pneg %p90
        %s508 = sand.u32 %s32, 1
        %s509 = scalar_lea.sflag [#allocation6], %s508
        %s510 = sand.u32 %s106, 1
        %s511 = smul.addr %s510, 8
        %s512 = scalar_lea.vmem [#allocation7], %s511
        %p513 = pneg %p119
        %p514 = pneg %p116
        %s515 = sand.u32 %s32, 1
        %s516 = scalar_lea.sflag [#allocation9], %s515
        %s517 = sand.u32 %s132, 1
        %s518 = smul.addr %s517, 8
        %s519 = scalar_lea.vmem [#allocation8], %s518
        %p520 = pneg %p145
        %p521 = pneg %p142
        %p522 = scmp.lt.s32.totalorder %s36, 3
        %s523 = scalar_select %p522, %s36, 3
        %s524 = scalar_lea.vmem %s4, %s523
        %p525 = pneg %p171
        %p526 = pneg %p168
        %p527 = scmp.lt.s32.totalorder %s36, 3
        %s528 = scalar_select %p527, %s36, 3
        %s529 = scalar_lea.vmem %s5, %s528
        %p530 = pneg %p197
        %p531 = pneg %p194
        %p532 = scmp.lt.s32.totalorder %s36, 3
        %s533 = scalar_select %p532, %s36, 3
        %s534 = scalar_lea.vmem %s6, %s533
        %p535 = pneg %p223
        %p536 = pneg %p220
        %s537 = sand.u32 %s32, 1
        %s538 = scalar_lea.sflag [#allocation9], %s537
        %s539 = sand.u32 %s236, 1
        %s540 = smul.addr %s539, 8
        %s541 = scalar_lea.vmem [#allocation10], %s540
        %p542 = pneg %p249
        %p543 = pneg %p246
        %p544 = pneg %p270
        %p545 = pneg %p267
        %p546 = pneg %p298
        %p547 = pneg %p295
        %s548 = sand.u32 %s285, 1
        %s549 = scalar_lea.sflag [#allocation4], %s548
        %s550 = sand.u32 %s285, 1
        %s551 = smul.addr %s550, 8
        %s552 = scalar_lea.vmem [#allocation11], %s551
        %s553 = smul.u32 2, %s36
        %s554 = smul.u32 2, %s36
        %s555 = smul.u32 2, %s36
        %p556 = scmp.lt.s32.totalorder %s36, 3
        %s557 = scalar_select %p556, %s36, 3
        %s558 = scalar_lea.vmem %s4, %s557
        %p559 = scmp.lt.s32.totalorder %s36, 3
        %s560 = scalar_select %p559, %s36, 3
        %s561 = scalar_lea.vmem %s5, %s560
        %p562 = scmp.lt.s32.totalorder %s36, 3
        %s563 = scalar_select %p562, %s36, 3
        %s564 = scalar_lea.vmem %s6, %s563
        %v566 = vld [vmem:[%s453] sm:$0xf]
        %v567 = vld [vmem:[%s462] sm:$0xf]
        %v568 = vld [vmem:[%s462 + $0x4] sm:$0xf]
        %v569 = vld [vmem:[%s558] sm:$0x1]
        %v571 = vlaneseq
        %v572 = vshrl.u32 %v571, 7
        %v573 = vsub.s32 0, %v572
        %v574 = vrot.slane %v569, %v573
        %v578 = vunpack.c.l.b16 %v567
        %v579 = vunpack.c.l.b16 %v568
        %v580 = vpack.c.b16 %v579, %v578
        %vm581 = vcmask 523264
        %v583 = vsel %vm581, %v566, 0
        %v586 = vsel %vm581, %v580, 0
        %588 = vmatprep.subr.bf16.mxu0 0
        %589 = vmatpush1.bf16.xpose.msra.mxu0 %v586
        %590 = vmatprep.subr.bf16.mxu0 0
        %591 = vmatpush1.bf16.xpose.msra.mxu0 0
        %592 = vmatprep.subr.bf16.mxu0 0
        %593 = vmatpush1.bf16.xpose.msra.mxu0 0
        %594 = vmatprep.subr.bf16.mxu0 0
        %595 = vmatpush1.bf16.xpose.msra.mxu0 0
        %596 = vmatprep.subr.bf16.mxu0 0
        %597 = vmatpush1.bf16.xpose.msra.mxu0 0
        %598 = vmatprep.subr.bf16.mxu0 0
        %599 = vmatpush1.bf16.xpose.msra.mxu0 0
        %600 = vmatprep.subr.bf16.mxu0 0
        %601 = vmatpush1.bf16.xpose.msra.mxu0 0
        %602 = vmatprep.subr.bf16.mxu0 0
        %603 = vmatpush1.bf16.xpose.msra.mxu0 0
        %604 = vmatprep.subr.bf16.mxu0 0
        %605 = vmatpush1.bf16.xpose.msra.mxu0 0
        %606 = vmatprep.subr.bf16.mxu0 0
        %607 = vmatpush1.bf16.xpose.msra.mxu0 0
        %608 = vmatprep.subr.bf16.mxu0 0
        %609 = vmatpush1.bf16.xpose.msra.mxu0 0
        %610 = vmatprep.subr.bf16.mxu0 0
        %611 = vmatpush1.bf16.xpose.msra.mxu0 0
        %612 = vmatprep.subr.bf16.mxu0 0
        %613 = vmatpush1.bf16.xpose.msra.mxu0 0
        %614 = vmatprep.subr.bf16.mxu0 0
        %615 = vmatpush1.bf16.xpose.msra.mxu0 0
        %616 = vmatprep.subr.bf16.mxu0 0
        %617 = vmatpush1.bf16.xpose.msra.mxu0 0
        %618 = vmatprep.subr.bf16.mxu0 0
        %619 = vmatpush1.bf16.xpose.msra.mxu0 0
        %620 = vmatprep.mubr.bf16.mxu0 0
        %621 = vmatmul.mubr.bf16.gmra.mrb[0].mxu0 %v583
        %v622 = vpop.f32.mrb[0].mxu0
        %v623 = vadd.f32 %v574, %v622
        %v624 = vpop.f32.mrb[0].mxu0
        %v625 = vpop.f32.mrb[0].mxu0
        %v626 = vpop.f32.mrb[0].mxu0
        %627 = vdwg.mxu0
        %v628 = vld [vmem:[%s471] sm:$0xf]
        %v629 = vld [vmem:[%s471 + $0x4] sm:$0xf]
        %v630 = vld [vmem:[%s561] sm:$0x1]
        %v632 = vlaneseq
        %v633 = vshrl.u32 %v632, 7
        %v634 = vsub.s32 0, %v633
        %v635 = vrot.slane %v630, %v634
        %v639 = vunpack.c.l.b16 %v628
        %v640 = vunpack.c.l.b16 %v629
        %v641 = vpack.c.b16 %v640, %v639
        %v643 = vsel %vm581, %v641, 0
        %645 = vmatprep.subr.bf16.mxu0 0
        %646 = vmatpush1.bf16.xpose.msra.mxu0 %v643
        %647 = vmatprep.subr.bf16.mxu0 0
        %648 = vmatpush1.bf16.xpose.msra.mxu0 0
        %649 = vmatprep.subr.bf16.mxu0 0
        %650 = vmatpush1.bf16.xpose.msra.mxu0 0
        %651 = vmatprep.subr.bf16.mxu0 0
        %652 = vmatpush1.bf16.xpose.msra.mxu0 0
        %653 = vmatprep.subr.bf16.mxu0 0
        %654 = vmatpush1.bf16.xpose.msra.mxu0 0
        %655 = vmatprep.subr.bf16.mxu0 0
        %656 = vmatpush1.bf16.xpose.msra.mxu0 0
        %657 = vmatprep.subr.bf16.mxu0 0
        %658 = vmatpush1.bf16.xpose.msra.mxu0 0
        %659 = vmatprep.subr.bf16.mxu0 0
        %660 = vmatpush1.bf16.xpose.msra.mxu0 0
        %661 = vmatprep.subr.bf16.mxu0 0
        %662 = vmatpush1.bf16.xpose.msra.mxu0 0
        %663 = vmatprep.subr.bf16.mxu0 0
        %664 = vmatpush1.bf16.xpose.msra.mxu0 0
        %665 = vmatprep.subr.bf16.mxu0 0
        %666 = vmatpush1.bf16.xpose.msra.mxu0 0
        %667 = vmatprep.subr.bf16.mxu0 0
        %668 = vmatpush1.bf16.xpose.msra.mxu0 0
        %669 = vmatprep.subr.bf16.mxu0 0
        %670 = vmatpush1.bf16.xpose.msra.mxu0 0
        %671 = vmatprep.subr.bf16.mxu0 0
        %672 = vmatpush1.bf16.xpose.msra.mxu0 0
        %673 = vmatprep.subr.bf16.mxu0 0
        %674 = vmatpush1.bf16.xpose.msra.mxu0 0
        %675 = vmatprep.subr.bf16.mxu0 0
        %676 = vmatpush1.bf16.xpose.msra.mxu0 0
        %677 = vmatprep.mubr.bf16.mxu0 0
        %678 = vmatmul.mubr.bf16.gmra.mrb[0].mxu0 %v583
        %v679 = vpop.f32.mrb[0].mxu0
        %v680 = vadd.f32 %v635, %v679
        %v681 = vpop.f32.mrb[0].mxu0
        %v682 = vpop.f32.mrb[0].mxu0
        %v683 = vpop.f32.mrb[0].mxu0
        %684 = vdwg.mxu0
        %v685 = vld [vmem:[%s480] sm:$0xf]
        %v686 = vld [vmem:[%s480 + $0x4] sm:$0xf]
        %v687 = vld [vmem:[%s564] sm:$0x1]
        %v689 = vlaneseq
        %v690 = vshrl.u32 %v689, 7
        %v691 = vsub.s32 0, %v690
        %v692 = vrot.slane %v687, %v691
        %v696 = vunpack.c.l.b16 %v685
        %v697 = vunpack.c.l.b16 %v686
        %v698 = vpack.c.b16 %v697, %v696
        %v700 = vsel %vm581, %v698, 0
        %702 = vmatprep.subr.bf16.mxu0 0
        %703 = vmatpush1.bf16.xpose.msra.mxu0 %v700
        %704 = vmatprep.subr.bf16.mxu0 0
        %705 = vmatpush1.bf16.xpose.msra.mxu0 0
        %706 = vmatprep.subr.bf16.mxu0 0
        %707 = vmatpush1.bf16.xpose.msra.mxu0 0
        %708 = vmatprep.subr.bf16.mxu0 0
        %709 = vmatpush1.bf16.xpose.msra.mxu0 0
        %710 = vmatprep.subr.bf16.mxu0 0
        %711 = vmatpush1.bf16.xpose.msra.mxu0 0
        %712 = vmatprep.subr.bf16.mxu0 0
        %713 = vmatpush1.bf16.xpose.msra.mxu0 0
        %714 = vmatprep.subr.bf16.mxu0 0
        %715 = vmatpush1.bf16.xpose.msra.mxu0 0
        %716 = vmatprep.subr.bf16.mxu0 0
        %717 = vmatpush1.bf16.xpose.msra.mxu0 0
        %718 = vmatprep.subr.bf16.mxu0 0
        %719 = vmatpush1.bf16.xpose.msra.mxu0 0
        %720 = vmatprep.subr.bf16.mxu0 0
        %721 = vmatpush1.bf16.xpose.msra.mxu0 0
        %722 = vmatprep.subr.bf16.mxu0 0
        %723 = vmatpush1.bf16.xpose.msra.mxu0 0
        %724 = vmatprep.subr.bf16.mxu0 0
        %725 = vmatpush1.bf16.xpose.msra.mxu0 0
        %726 = vmatprep.subr.bf16.mxu0 0
        %727 = vmatpush1.bf16.xpose.msra.mxu0 0
        %728 = vmatprep.subr.bf16.mxu0 0
        %729 = vmatpush1.bf16.xpose.msra.mxu0 0
        %730 = vmatprep.subr.bf16.mxu0 0
        %731 = vmatpush1.bf16.xpose.msra.mxu0 0
        %732 = vmatprep.subr.bf16.mxu0 0
        %733 = vmatpush1.bf16.xpose.msra.mxu0 0
        %734 = vmatprep.mubr.bf16.mxu0 0
        %735 = vmatmul.mubr.bf16.gmra.mrb[0].mxu0 %v583
        %v736 = vpop.f32.mrb[0].mxu0
        %v737 = vadd.f32 %v692, %v736
        %v738 = vpop.f32.mrb[0].mxu0
        %v739 = vpop.f32.mrb[0].mxu0
        %v740 = vpop.f32.mrb[0].mxu0
        %741 = vdwg.mxu0
        %v742 = vpack.c.bf16 %v623, %v623
        %v743 = vpack.c.bf16 %v680, %v680
        %vm744 = vcmask 130048
        %v746 = vsel %vm744, %v742, 0
        %v749 = vsel %vm744, %v743, 0
        %751 = vmatprep.subr.bf16.mxu0 0
        %752 = vmatpush1.bf16.xpose.msra.mxu0 %v749
        %753 = vmatprep.subr.bf16.mxu0 0
        %754 = vmatpush1.bf16.xpose.msra.mxu0 0
        %755 = vmatprep.subr.bf16.mxu0 0
        %756 = vmatpush1.bf16.xpose.msra.mxu0 0
        %757 = vmatprep.subr.bf16.mxu0 0
        %758 = vmatpush1.bf16.xpose.msra.mxu0 0
        %759 = vmatprep.subr.bf16.mxu0 0
        %760 = vmatpush1.bf16.xpose.msra.mxu0 0
        %761 = vmatprep.subr.bf16.mxu0 0
        %762 = vmatpush1.bf16.xpose.msra.mxu0 0
        %763 = vmatprep.subr.bf16.mxu0 0
        %764 = vmatpush1.bf16.xpose.msra.mxu0 0
        %765 = vmatprep.subr.bf16.mxu0 0
        %766 = vmatpush1.bf16.xpose.msra.mxu0 0
        %767 = vmatprep.subr.bf16.mxu0 0
        %768 = vmatpush1.bf16.xpose.msra.mxu0 0
        %769 = vmatprep.subr.bf16.mxu0 0
        %770 = vmatpush1.bf16.xpose.msra.mxu0 0
        %771 = vmatprep.subr.bf16.mxu0 0
        %772 = vmatpush1.bf16.xpose.msra.mxu0 0
        %773 = vmatprep.subr.bf16.mxu0 0
        %774 = vmatpush1.bf16.xpose.msra.mxu0 0
        %775 = vmatprep.subr.bf16.mxu0 0
        %776 = vmatpush1.bf16.xpose.msra.mxu0 0
        %777 = vmatprep.subr.bf16.mxu0 0
        %778 = vmatpush1.bf16.xpose.msra.mxu0 0
        %779 = vmatprep.subr.bf16.mxu0 0
        %780 = vmatpush1.bf16.xpose.msra.mxu0 0
        %781 = vmatprep.subr.bf16.mxu0 0
        %782 = vmatpush1.bf16.xpose.msra.mxu0 0
        %783 = vmatprep.mubr.bf16.mxu0 0
        %784 = vmatmul.mubr.bf16.gmra.mrb[0].mxu0 %v746
        %v785 = vpop.f32.mrb[0].mxu0
        %v786 = vadd.f32 0.0, %v785
        %v787 = vpop.f32.mrb[0].mxu0
        %v788 = vpop.f32.mrb[0].mxu0
        %v789 = vpop.f32.mrb[0].mxu0
        %790 = vdwg.mxu0
        %v791 = vmul.f32 %v786, 0.25
        %vm792 = vcmask 64512
        %v793 = vsel %vm792, %v791, -inf
        %794 = vmax.xlane.f32.xlu0 %v793
        %v795 = vpop.xlane.xlu0 %794
        %v796 = vsub.f32 %v791, %v795
        %v797 = vmul.f32 %v796, 1.442695
        %v798 = vpow.pop %v797
        %v799 = vsel %vm792, %v798, 0.0
        %800 = vadd.xlane.f32.xlu0 %v799
        %v801 = vpop.xlane.xlu0 %800
        %v802 = vrcp.pop %v801
        %v803 = vmul.f32 %v798, %v802
        %v804 = vpack.c.bf16 %v803, %v803
        %v805 = vpack.c.bf16 %v737, %v737
        %v807 = vsel %vm792, %v804, 0
        %vm809 = vcmask 1043456
        %v811 = vsel %vm809, %v805, 0
        %813 = vmatprep.subr.bf16.mxu0 0
        %814 = vmatpush1.bf16.msra.mxu0 %v811
        %815 = vmatprep.subr.bf16.mxu0 0
        %816 = vmatpush1.bf16.msra.mxu0 0
        %817 = vmatprep.subr.bf16.mxu0 0
        %818 = vmatpush1.bf16.msra.mxu0 0
        %819 = vmatprep.subr.bf16.mxu0 0
        %820 = vmatpush1.bf16.msra.mxu0 0
        %821 = vmatprep.subr.bf16.mxu0 0
        %822 = vmatpush1.bf16.msra.mxu0 0
        %823 = vmatprep.subr.bf16.mxu0 0
        %824 = vmatpush1.bf16.msra.mxu0 0
        %825 = vmatprep.subr.bf16.mxu0 0
        %826 = vmatpush1.bf16.msra.mxu0 0
        %827 = vmatprep.subr.bf16.mxu0 0
        %828 = vmatpush1.bf16.msra.mxu0 0
        %829 = vmatprep.subr.bf16.mxu0 0
        %830 = vmatpush1.bf16.msra.mxu0 0
        %831 = vmatprep.subr.bf16.mxu0 0
        %832 = vmatpush1.bf16.msra.mxu0 0
        %833 = vmatprep.subr.bf16.mxu0 0
        %834 = vmatpush1.bf16.msra.mxu0 0
        %835 = vmatprep.subr.bf16.mxu0 0
        %836 = vmatpush1.bf16.msra.mxu0 0
        %837 = vmatprep.subr.bf16.mxu0 0
        %838 = vmatpush1.bf16.msra.mxu0 0
        %839 = vmatprep.subr.bf16.mxu0 0
        %840 = vmatpush1.bf16.msra.mxu0 0
        %841 = vmatprep.subr.bf16.mxu0 0
        %842 = vmatpush1.bf16.msra.mxu0 0
        %843 = vmatprep.subr.bf16.mxu0 0
        %844 = vmatpush1.bf16.msra.mxu0 0
        %845 = vmatprep.mubr.bf16.mxu0 0
        %846 = vmatmul.mubr.bf16.gmra.mrb[0].mxu0 %v807
        %v847 = vpop.f32.mrb[0].mxu0
        %v848 = vadd.f32 0.0, %v847
        %v849 = vpop.f32.mrb[0].mxu0
        %v850 = vpop.f32.mrb[0].mxu0
        %v851 = vpop.f32.mrb[0].mxu0
        %852 = vdwg.mxu0
        %v853 = vpack.c.bf16 %v848, %v848
        %v854 = vld [vmem:[%s489] sm:$0xf]
        %v855 = vld [vmem:[%s489 + $0x4] sm:$0xf]
        %v856 = vld [vmem:[%s8] sm:$0x1]
        %v857 = vmul.f32 %v856, 0.25
        %v859 = vlaneseq
        %v860 = vshrl.u32 %v859, 7
        %v861 = vsub.s32 0, %v860
        %v862 = vrot.slane %v857, %v861
        %v866 = vunpack.c.l.b16 %v854
        %v867 = vunpack.c.l.b16 %v855
        %v868 = vpack.c.b16 %v867, %v866
        %v871 = vsel %vm744, %v853, 0
        %873 = vmatprep.subr.bf16.mxu0 0
        %874 = vmatpush1.bf16.msra.mxu0 %v868
        %875 = vmatprep.subr.bf16.mxu0 0
        %876 = vmatpush1.bf16.msra.mxu0 0
        %877 = vmatprep.subr.bf16.mxu0 0
        %878 = vmatpush1.bf16.msra.mxu0 0
        %879 = vmatprep.subr.bf16.mxu0 0
        %880 = vmatpush1.bf16.msra.mxu0 0
        %881 = vmatprep.subr.bf16.mxu0 0
        %882 = vmatpush1.bf16.msra.mxu0 0
        %883 = vmatprep.subr.bf16.mxu0 0
        %884 = vmatpush1.bf16.msra.mxu0 0
        %885 = vmatprep.subr.bf16.mxu0 0
        %886 = vmatpush1.bf16.msra.mxu0 0
        %887 = vmatprep.subr.bf16.mxu0 0
        %888 = vmatpush1.bf16.msra.mxu0 0
        %889 = vmatprep.subr.bf16.mxu0 0
        %890 = vmatpush1.bf16.msra.mxu0 0
        %891 = vmatprep.subr.bf16.mxu0 0
        %892 = vmatpush1.bf16.msra.mxu0 0
        %893 = vmatprep.subr.bf16.mxu0 0
        %894 = vmatpush1.bf16.msra.mxu0 0
        %895 = vmatprep.subr.bf16.mxu0 0
        %896 = vmatpush1.bf16.msra.mxu0 0
        %897 = vmatprep.subr.bf16.mxu0 0
        %898 = vmatpush1.bf16.msra.mxu0 0
        %899 = vmatprep.subr.bf16.mxu0 0
        %900 = vmatpush1.bf16.msra.mxu0 0
        %901 = vmatprep.subr.bf16.mxu0 0
        %902 = vmatpush1.bf16.msra.mxu0 0
        %903 = vmatprep.subr.bf16.mxu0 0
        %904 = vmatpush1.bf16.msra.mxu0 0
        %905 = vmatprep.mubr.bf16.mxu0 0
        %906 = vmatmul.mubr.bf16.gmra.mrb[0].mxu0 %v871
        %v907 = vpop.f32.mrb[0].mxu0
        %v908 = vadd.f32 %v862, %v907
        %v909 = vpop.f32.mrb[0].mxu0
        %v910 = vpop.f32.mrb[0].mxu0
        %v911 = vpop.f32.mrb[0].mxu0
        %912 = vdwg.mxu0
        %913 = vst.msk [vmem:[%s552] sm:$0xff] %vm581, %v908
        %s914 = sand.u32 %s285, 1
        %s915 = scalar_lea.sflag [#allocation4], %s914
        %s916 = sand.u32 %s285, 1
        %s917 = smul.addr %s916, 8
        %s918 = scalar_lea.vmem [#allocation11], %s917
        // Predicated region
        $region77: #{tpu_custom_call.1} parent=55 // pred_check
          %p919 = pneg %p295
        $region78: #{tpu_custom_call.1} parent=55 // pred_check_branch
          %921 = sbr.rel (%p919) target = $region80
        $region79: #{tpu_custom_call.1} parent=55 // pred_region
          %s923 = ssub.s32 128, 128
          %924 = vsyncadd %s915, %s923
          %s925 = smul.addr %s36, 2
          %s926 = sadd.s32 %s37, %s925
          %s927 = smul.addr %s926, 128
          %s928 = scalar_lea.hbm %s9, %s927
          %s930 = sshll.u32 %s918, 4
          %s931 = int_to_ptr.vmem [resolvable:$true] %s930
          %933 = dma.vmem_to_hbm [thread:$0]  %s931, 128, %s928, %s915
        $region80: #{tpu_custom_call.1} parent=55 // pred_fallthru
          _
      $region56: #{tpu_custom_call.1} parent=5 // pred_fallthru
        _
      %p934 = scmp.le.s32.totalorder 2, %s27
      // Predicated region
      $region81: #{tpu_custom_call.1} parent=5 // pred_check
        %p935 = pneg %p934
      $region82: #{tpu_custom_call.1} parent=5 // pred_check_branch
        %937 = sbr.rel (%p935) target = $region84
      $region83: #{tpu_custom_call.1} parent=5 // pred_region
        %s938 = ssub.s32 %s27, 2
        // Predicated region
        $region85: #{tpu_custom_call.1} parent=83 // pred_check
          %p939 = pneg %p301
        $region86: #{tpu_custom_call.1} parent=83 // pred_check_branch
          %941 = sbr.rel (%p939) target = $region88
        $region87: #{tpu_custom_call.1} parent=83 // pred_region
          %s942 = sand.u32 %s286, 1
          %s943 = scalar_lea.sflag [#allocation4], %s942
          %s944 = sand.u32 %s286, 1
          %s945 = smul.addr %s944, 8
          %s946 = scalar_lea.vmem [#allocation11], %s945
          %947 = dma.done %s943, 128
        $region88: #{tpu_custom_call.1} parent=83 // pred_fallthru
          _
      $region84: #{tpu_custom_call.1} parent=5 // pred_fallthru
        _
    $region6: #{tpu_custom_call.1} parent=1 // loop_footer
      %s31 = sadd.s32 1, %s27
    $region7: #{tpu_custom_call.1} parent=1 // loop_footer_branch
      %26 = sbr.rel target = $region3
    $region8: #{tpu_custom_call.1} parent=1 // loop_exit
      _
    %948 = vsyncpa [#allocation3], 1
    %s949 = scalar_lea.sflag [#allocation3], 1
    %950 = vsyncpa %s949, 1
    %951 = vsyncpa [#allocation6], 1
    %s952 = scalar_lea.sflag [#allocation6], 1
    %953 = vsyncpa %s952, 1
    %954 = vsyncpa [#allocation9], 1
    %s955 = scalar_lea.sflag [#allocation9], 1
    %956 = vsyncpa %s955, 1
    %957 = vsyncpa [#allocation4], 1
    %s958 = scalar_lea.sflag [#allocation4], 1
    %959 = vsyncpa %s958, 1

</llo_original>
